<compile_context>
chip_gen: v6e
topology: v6e:2x2x1
jax: 0.10.0
libtpu: 0.0.40
codegen_flags: <defaults>
</compile_context>

<pallas_src>
import numpy as np
import jax
import jax.numpy as jnp
from jax import lax
from jax.experimental import pallas as pl
from jax.experimental.pallas import tpu as pltpu

B, T, F, H = 64, 16, 16, 32     # batch, discrete time points, features, hidden
TB = 16                         # batch tile -> grid = (B // TB,) = (4,)
LANES = TB * T                  # 256: lane-dense slab width (>= 128)

assert B % TB == 0, "kernel assumes B % TB == 0"
assert T & (T - 1) == 0, "kernel assumes T is a power of two (segment masks use &)"


def ictsurf_kernel(x_ref, w1_ref, b1_ref, w2_ref, dt_ref, b2_ref,
                   preds_ref, surv_ref):
    # ---------------- net(x): 2-layer MLP, one batched contraction ----------
    # x_ref: (TB*T, F) -- rows are the flattened (sample, time) pairs of this tile.
    h1 = jnp.dot(x_ref[...], w1_ref[...],
                 preferred_element_type=jnp.float32) + b1_ref[...]
    h1 = jnp.maximum(h1, 0.0)                                   # ReLU, (TB*T, H)

    # second Linear (out_features=1): (1,H) . (TB*T,H)^T -> lane-dense (1, TB*T)
    preds = lax.dot_general(
        w2_ref[...], h1,
        dimension_numbers=(((1,), (1,)), ((), ())),
        preferred_element_type=jnp.float32) + b2_ref[0]
    preds_ref[0] = preds                                        # (1, TB*T)

    # ---------------- pred_to_hazard: softplus (stable form) ----------------
    hz = jnp.maximum(preds, 0.0) + jnp.log(1.0 + jnp.exp(-jnp.abs(preds)))

    # -------- continuous_hazard_to_surv (trapezoid) --------------------------
    # Each sample occupies a contiguous length-T segment along the lane axis.
    # dt_ref holds diff(input_times) with a leading 0 per segment (pad_col start),
    # which also masks the value the roll wraps in at every segment start.
    hz_prev = pltpu.roll(hz, shift=1, axis=1)
    h = 0.5 * (hz + hz_prev) * dt_ref[...]                      # (1, TB*T)

    # segmented inclusive cumsum over each length-T segment: log2(T) roll+adds
    lane = lax.broadcasted_iota(jnp.int32, (1, LANES), 1)
    pos = lane & (T - 1)                                        # position inside segment
    cum = h
    s = 1
    while s < T:                                                # static unroll (4 steps)
        cum = cum + jnp.where(pos >= s, pltpu.roll(cum, shift=s, axis=1), 0.0)
        s *= 2
    surv_ref[0] = jnp.exp(-cum)


def ictsurf_forward(x, w1, b1, w2, b2, input_times):
    """x: (B, T, F) float32; input_times: (T,) shared across the batch."""
    assert x.shape == (B, T, F)
    x_flat = x.reshape(B * T, F)

    # trapezoid dt with leading zero (== pad_col(..., where='start')), tiled so each
    # length-T lane segment of the slab sees its own dt row.
    dtpad = jnp.concatenate(
        [jnp.zeros((1,), jnp.float32), jnp.diff(input_times.astype(jnp.float32))])
    dt_row = jnp.tile(dtpad, TB).reshape(1, LANES)
    b2s = b2.reshape(1)                                         # scalar bias -> SMEM

    preds_slab, surv_slab = pl.pallas_call(
        ictsurf_kernel,
        out_shape=(jax.ShapeDtypeStruct((B // TB, 1, LANES), jnp.float32),   # preds
                   jax.ShapeDtypeStruct((B // TB, 1, LANES), jnp.float32)),  # surv
        grid_spec=pltpu.PrefetchScalarGridSpec(
            num_scalar_prefetch=0,
            grid=(B // TB,),
            in_specs=[
                pl.BlockSpec((LANES, F), lambda i: (i, 0)),                  # x rows
                pl.BlockSpec((F, H), lambda i: (0, 0)),                      # w1
                pl.BlockSpec((1, H), lambda i: (0, 0)),                      # b1
                pl.BlockSpec((1, H), lambda i: (0, 0)),                      # w2
                pl.BlockSpec((1, LANES), lambda i: (0, 0)),                  # dt row
                pl.BlockSpec(memory_space=pltpu.MemorySpace.SMEM),           # b2 scalar
            ],
            out_specs=(
                pl.BlockSpec((1, 1, LANES), lambda i: (i, 0, 0)),
                pl.BlockSpec((1, 1, LANES), lambda i: (i, 0, 0)),
            ),
        ),
        compiler_params=pltpu.CompilerParams(
            dimension_semantics=("parallel",)),
    )(x_flat, w1, b1, w2, dt_row, b2s)

    preds = preds_slab.reshape(B, T)
    surv = surv_slab.reshape(B, T)
    return preds, surv


if __name__ == "__main__":
    key = jax.random.PRNGKey(0)
    kx, k1, k2, k3, k4 = jax.random.split(key, 5)

    x = jax.random.normal(kx, (B, T, F), jnp.float32)
    lim1 = 1.0 / np.sqrt(F)
    w1 = jax.random.uniform(k1, (F, H), jnp.float32, -lim1, lim1)
    b1 = jax.random.uniform(k2, (1, H), jnp.float32, -lim1, lim1)
    lim2 = 1.0 / np.sqrt(H)
    w2 = jax.random.uniform(k3, (1, H), jnp.float32, -lim2, lim2)
    b2 = jax.random.uniform(k4, (1, 1), jnp.float32, -lim2, lim2)
    input_times = jnp.linspace(0.0, 2.0, T, dtype=jnp.float32)

    preds, surv = ictsurf_forward(x, w1, b1, w2, b2, input_times)
    jax.block_until_ready((preds, surv))

    # ---- pure-JAX reference (mirrors the PyTorch semantics) ----------------
    xf = x.reshape(B * T, F)
    h1_ref = jnp.maximum(xf @ w1 + b1, 0.0)
    preds_ref = ((h1_ref * w2).sum(-1) + b2[0, 0]).reshape(B, T)
    hz_ref = jax.nn.softplus(preds_ref)
    trap = 0.5 * (hz_ref[:, :-1] + hz_ref[:, 1:])               # conv1d [0.5, 0.5]
    dt = jnp.diff(input_times)
    h = trap * dt
    hpad = jnp.concatenate([jnp.zeros((B, 1), jnp.float32), h], axis=1)  # pad_col start
    surv_ref = jnp.exp(-jnp.cumsum(hpad, axis=1))

    assert np.allclose(np.asarray(preds), np.asarray(preds_ref), rtol=1e-3, atol=1e-3)
    assert np.allclose(np.asarray(surv), np.asarray(surv_ref), rtol=1e-3, atol=1e-3)

    # TODO(synk): fit()/evaluate()/get_loader() (training loop, DataLoader,
    # checkpointing, pandas reporting) have no kernel equivalent and are
    # intentionally not implemented.  Only method='trapezoid' (module default)
    # of continuous_hazard_to_surv is fused here.
    print("KERNEL_OK")
</pallas_src>

<mosaic_0001>
module attributes {stable_mosaic.version = 11 : i64} {
  func.func @ictsurf_kernel(%arg0: i32, %arg1: memref<256x16xf32, #tpu.memory_space<vmem>>, %arg2: memref<16x32xf32, #tpu.memory_space<vmem>>, %arg3: memref<1x32xf32, #tpu.memory_space<vmem>>, %arg4: memref<1x32xf32, #tpu.memory_space<vmem>>, %arg5: memref<1x256xf32, #tpu.memory_space<vmem>>, %arg6: memref<1xf32, #tpu.memory_space<smem>>, %arg7: memref<1x1x256xf32, #tpu.memory_space<vmem>>, %arg8: memref<1x1x256xf32, #tpu.memory_space<vmem>>) attributes {dimension_semantics = [#tpu.dimension_semantics<parallel>], iteration_bounds = array<i64: 4>, scalar_prefetch = 0 : i64, scratch_operands = 0 : i64, tpu.core_type = #tpu.core_type<tc>, window_params = [{transform_indices = @transform_0, window_bounds = array<i64: 256, 16>}, {pipeline_mode = #tpu.pipeline_mode<synchronous>, transform_indices = @transform_1, window_bounds = array<i64: 16, 32>}, {pipeline_mode = #tpu.pipeline_mode<synchronous>, transform_indices = @transform_2, window_bounds = array<i64: 1, 32>}, {pipeline_mode = #tpu.pipeline_mode<synchronous>, transform_indices = @transform_3, window_bounds = array<i64: 1, 32>}, {pipeline_mode = #tpu.pipeline_mode<synchronous>, transform_indices = @transform_4, window_bounds = array<i64: 1, 256>}, {transform_indices = @transform_5, window_bounds = array<i64: 1>}, {transform_indices = @transform_6, window_bounds = array<i64: 1, 1, 256>}, {transform_indices = @transform_7, window_bounds = array<i64: 1, 1, 256>}]} {
    %c0 = arith.constant 0 : index
    %c0_0 = arith.constant 0 : index
    %0 = vector.load %arg1[%c0, %c0_0] : memref<256x16xf32, #tpu.memory_space<vmem>>, vector<256x16xf32>
    %c0_1 = arith.constant 0 : index
    %c0_2 = arith.constant 0 : index
    %1 = vector.load %arg2[%c0_1, %c0_2] : memref<16x32xf32, #tpu.memory_space<vmem>>, vector<16x32xf32>
    %cst = arith.constant dense<0.000000e+00> : vector<256x32xf32>
    %2 = tpu.matmul %0, %1, %cst {dimension_numbers = #tpu.dot_dimension_numbers<[1], [0], [0], [1], [0, 0, 1, 1], [], []>} : vector<256x16xf32>, vector<16x32xf32>, vector<256x32xf32> -> vector<256x32xf32>
    %c0_3 = arith.constant 0 : index
    %c0_4 = arith.constant 0 : index
    %3 = vector.load %arg3[%c0_3, %c0_4] : memref<1x32xf32, #tpu.memory_space<vmem>>, vector<1x32xf32>
    %4 = vector.broadcast %3 : vector<1x32xf32> to vector<256x32xf32>
    %5 = arith.addf %2, %4 : vector<256x32xf32>
    %cst_5 = arith.constant 0.000000e+00 : f32
    %6 = vector.broadcast %cst_5 : f32 to vector<256x32xf32>
    %7 = arith.maximumf %5, %6 : vector<256x32xf32>
    %c0_6 = arith.constant 0 : index
    %c0_7 = arith.constant 0 : index
    %8 = vector.load %arg4[%c0_6, %c0_7] : memref<1x32xf32, #tpu.memory_space<vmem>>, vector<1x32xf32>
    %cst_8 = arith.constant dense<0.000000e+00> : vector<1x256xf32>
    %9 = tpu.matmul %8, %7, %cst_8 {dimension_numbers = #tpu.dot_dimension_numbers<[1], [1], [0], [0], [0, 0, 1, 0], [], []>} : vector<1x32xf32>, vector<256x32xf32>, vector<1x256xf32> -> vector<1x256xf32>
    %c0_9 = arith.constant 0 : index
    %10 = memref.load %arg6[%c0_9] : memref<1xf32, #tpu.memory_space<smem>>
    %11 = vector.broadcast %10 : f32 to vector<1x256xf32>
    %12 = arith.addf %9, %11 : vector<1x256xf32>
    %c0_10 = arith.constant 0 : index
    %c0_11 = arith.constant 0 : index
    %c0_12 = arith.constant 0 : index
    %13 = vector.load %arg7[%c0_10, %c0_11, %c0_12] : memref<1x1x256xf32, #tpu.memory_space<vmem>>, vector<1x1x256xf32>
    %14 = vector.shape_cast %13 : vector<1x1x256xf32> to vector<1x256xf32>
    %15 = vector.shape_cast %12 : vector<1x256xf32> to vector<1x1x256xf32>
    tpu.vector_store %arg7[%c0_10, %c0_11, %c0_12], %15 {strides = array<i32>} : memref<1x1x256xf32, #tpu.memory_space<vmem>>, vector<1x1x256xf32>,
    %cst_13 = arith.constant 0.000000e+00 : f32
    %16 = vector.broadcast %cst_13 : f32 to vector<1x256xf32>
    %17 = arith.maximumf %12, %16 : vector<1x256xf32>
    %18 = math.absf %12 : vector<1x256xf32>
    %cst_14 = arith.constant 0.000000e+00 : f32
    %19 = vector.broadcast %cst_14 : f32 to vector<1x256xf32>
    %20 = arith.subf %19, %18 : vector<1x256xf32>
    %21 = math.exp %20 : vector<1x256xf32>
    %cst_15 = arith.constant 1.000000e+00 : f32
    %22 = vector.broadcast %cst_15 : f32 to vector<1x256xf32>
    %23 = arith.addf %22, %21 : vector<1x256xf32>
    %24 = math.log %23 : vector<1x256xf32>
    %25 = arith.addf %17, %24 : vector<1x256xf32>
    %c1_i32 = arith.constant 1 : i32
    %26 = tpu.dynamic_rotate %25 by %c1_i32 dim 1 : vector<1x256xf32>, i32 -> vector<1x256xf32>
    %27 = arith.addf %25, %26 : vector<1x256xf32>
    %cst_16 = arith.constant 5.000000e-01 : f32
    %28 = vector.broadcast %cst_16 : f32 to vector<1x256xf32>
    %29 = arith.mulf %28, %27 : vector<1x256xf32>
    %c0_17 = arith.constant 0 : index
    %c0_18 = arith.constant 0 : index
    %30 = vector.load %arg5[%c0_17, %c0_18] : memref<1x256xf32, #tpu.memory_space<vmem>>, vector<1x256xf32>
    %31 = arith.mulf %29, %30 : vector<1x256xf32>
    %32 = tpu.iota {dimensions = array<i32: 1>} : vector<1x256xi32>
    %c15_i32 = arith.constant 15 : i32
    %33 = vector.broadcast %c15_i32 : i32 to vector<1x256xi32>
    %34 = arith.andi %32, %33 : vector<1x256xi32>
    %c1_i32_19 = arith.constant 1 : i32
    %35 = vector.broadcast %c1_i32_19 : i32 to vector<1x256xi32>
    %36 = arith.cmpi sge, %34, %35 : vector<1x256xi32>
    %c1_i32_20 = arith.constant 1 : i32
    %37 = tpu.dynamic_rotate %31 by %c1_i32_20 dim 1 : vector<1x256xf32>, i32 -> vector<1x256xf32>
    %cst_21 = arith.constant 0.000000e+00 : f32
    %38 = vector.broadcast %cst_21 : f32 to vector<1x256xf32>
    %39 = arith.select %36, %37, %38 : vector<1x256xi1>, vector<1x256xf32>
    %40 = arith.addf %31, %39 : vector<1x256xf32>
    %c2_i32 = arith.constant 2 : i32
    %41 = vector.broadcast %c2_i32 : i32 to vector<1x256xi32>
    %42 = arith.cmpi sge, %34, %41 : vector<1x256xi32>
    %c2_i32_22 = arith.constant 2 : i32
    %43 = tpu.dynamic_rotate %40 by %c2_i32_22 dim 1 : vector<1x256xf32>, i32 -> vector<1x256xf32>
    %cst_23 = arith.constant 0.000000e+00 : f32
    %44 = vector.broadcast %cst_23 : f32 to vector<1x256xf32>
    %45 = arith.select %42, %43, %44 : vector<1x256xi1>, vector<1x256xf32>
    %46 = arith.addf %40, %45 : vector<1x256xf32>
    %c4_i32 = arith.constant 4 : i32
    %47 = vector.broadcast %c4_i32 : i32 to vector<1x256xi32>
    %48 = arith.cmpi sge, %34, %47 : vector<1x256xi32>
    %c4_i32_24 = arith.constant 4 : i32
    %49 = tpu.dynamic_rotate %46 by %c4_i32_24 dim 1 : vector<1x256xf32>, i32 -> vector<1x256xf32>
    %cst_25 = arith.constant 0.000000e+00 : f32
    %50 = vector.broadcast %cst_25 : f32 to vector<1x256xf32>
    %51 = arith.select %48, %49, %50 : vector<1x256xi1>, vector<1x256xf32>
    %52 = arith.addf %46, %51 : vector<1x256xf32>
    %c8_i32 = arith.constant 8 : i32
    %53 = vector.broadcast %c8_i32 : i32 to vector<1x256xi32>
    %54 = arith.cmpi sge, %34, %53 : vector<1x256xi32>
    %c8_i32_26 = arith.constant 8 : i32
    %55 = tpu.dynamic_rotate %52 by %c8_i32_26 dim 1 : vector<1x256xf32>, i32 -> vector<1x256xf32>
    %cst_27 = arith.constant 0.000000e+00 : f32
    %56 = vector.broadcast %cst_27 : f32 to vector<1x256xf32>
    %57 = arith.select %54, %55, %56 : vector<1x256xi1>, vector<1x256xf32>
    %58 = arith.addf %52, %57 : vector<1x256xf32>
    %cst_28 = arith.constant 0.000000e+00 : f32
    %59 = vector.broadcast %cst_28 : f32 to vector<1x256xf32>
    %60 = arith.subf %59, %58 : vector<1x256xf32>
    %61 = math.exp %60 : vector<1x256xf32>
    %c0_29 = arith.constant 0 : index
    %c0_30 = arith.constant 0 : index
    %c0_31 = arith.constant 0 : index
    %62 = vector.load %arg8[%c0_29, %c0_30, %c0_31] : memref<1x1x256xf32, #tpu.memory_space<vmem>>, vector<1x1x256xf32>
    %63 = vector.shape_cast %62 : vector<1x1x256xf32> to vector<1x256xf32>
    %64 = vector.shape_cast %61 : vector<1x256xf32> to vector<1x1x256xf32>
    tpu.vector_store %arg8[%c0_29, %c0_30, %c0_31], %64 {strides = array<i32>} : memref<1x1x256xf32, #tpu.memory_space<vmem>>, vector<1x1x256xf32>,
    return
  }
  func.func @transform_0(%arg0: i32) -> (i32, i32) {
    %c0_i32 = arith.constant 0 : i32
    %c0_i32_0 = arith.constant 0 : i32
    return %arg0, %c0_i32 : i32, i32
  }
  func.func @transform_1(%arg0: i32) -> (i32, i32) {
    %c0_i32 = arith.constant 0 : i32
    %c0_i32_0 = arith.constant 0 : i32
    %c0_i32_1 = arith.constant 0 : i32
    return %c0_i32, %c0_i32_0 : i32, i32
  }
  func.func @transform_2(%arg0: i32) -> (i32, i32) {
    %c0_i32 = arith.constant 0 : i32
    %c0_i32_0 = arith.constant 0 : i32
    %c0_i32_1 = arith.constant 0 : i32
    return %c0_i32, %c0_i32_0 : i32, i32
  }
  func.func @transform_3(%arg0: i32) -> (i32, i32) {
    %c0_i32 = arith.constant 0 : i32
    %c0_i32_0 = arith.constant 0 : i32
    %c0_i32_1 = arith.constant 0 : i32
    return %c0_i32, %c0_i32_0 : i32, i32
  }
  func.func @transform_4(%arg0: i32) -> (i32, i32) {
    %c0_i32 = arith.constant 0 : i32
    %c0_i32_0 = arith.constant 0 : i32
    %c0_i32_1 = arith.constant 0 : i32
    return %c0_i32, %c0_i32_0 : i32, i32
  }
  func.func @transform_5(%arg0: i32) -> i32 {
    %c0_i32 = arith.constant 0 : i32
    %c0_i32_0 = arith.constant 0 : i32
    return %c0_i32 : i32
  }
  func.func @transform_6(%arg0: i32) -> (i32, i32, i32) {
    %c0_i32 = arith.constant 0 : i32
    %c0_i32_0 = arith.constant 0 : i32
    %c0_i32_1 = arith.constant 0 : i32
    return %arg0, %c0_i32, %c0_i32_0 : i32, i32, i32
  }
  func.func @transform_7(%arg0: i32) -> (i32, i32, i32) {
    %c0_i32 = arith.constant 0 : i32
    %c0_i32_0 = arith.constant 0 : i32
    %c0_i32_1 = arith.constant 0 : i32
    return %arg0, %c0_i32, %c0_i32_0 : i32, i32, i32
  }
}

</mosaic_0001>

<llo_original>
// kernel: tpu_custom_call.1
$region0: #{tpu_custom_call.1}
  #allocation0 [shape = 'u32[]', space=smem, size = 0x4, offset = 0x4, fixed_abs, tag = 'smem constant byte address 0x4 - core index']
  #allocation1 [shape = 'u32[144,128]{1,0:T(1,128)}', space=vmem, size = 0x12000, scoped, tag = 'internal scratch']
  #allocation2 [shape = 'f32[1]{0:T(128)S(6)}', space=smem, size = 0x200, scoped, tag = 'scoped memory for tpu_custom_call.1']
  %s0 = inlined_call_operand.vmem [shape: f32[1024,16], index: 0, kind: input, shape index: {}]
  %s1 = inlined_call_operand.vmem [shape: f32[16,32], index: 1, kind: input, shape index: {}]
  %s2 = inlined_call_operand.vmem [shape: f32[1,32], index: 2, kind: input, shape index: {}]
  %s3 = inlined_call_operand.vmem [shape: f32[1,32], index: 3, kind: input, shape index: {}]
  %s4 = inlined_call_operand.vmem [shape: f32[1,256], index: 4, kind: input, shape index: {}]
  %s5 = inlined_call_operand.<no memory space> [shape: f32[1], index: 5, kind: input, shape index: {}]
  %s6 = inlined_call_operand.hbm [shape: f32[4,1,256], index: 6, kind: output, shape index: {0}]
  %s7 = inlined_call_operand.hbm [shape: f32[4,1,256], index: 7, kind: output, shape index: {1}]
  %8 = xla_tuple %s6, %s7
  %s9 = sld [smem:[#allocation0]]
  $region65: #{tpu_custom_call.1} parent=0
    _
  %s11 = ssub.s32 1, %s9
  %s12 = scalar_select 0, %s11, %s9
  %13 = sst [smem:[#allocation2]] %s5
  $region1: #{tpu_custom_call.1} parent=0
    #allocation3 [shape = 'u8[2048]{0}', space=vmem, size = 0x800, scoped, tag = 'output window, operand 0']
    #allocation4 [shape = 's32[2]{0}', space=sflag, size = 0x8, scoped, tag = 'scoped memory for tpu_custom_call.1']
    #allocation5 [shape = 'u8[2048]{0}', space=vmem, size = 0x800, scoped, tag = 'output window, operand 1']
    #allocation6 [shape = 's32[2]{0}', space=sflag, size = 0x8, scoped, tag = 'scoped memory for tpu_custom_call.1']
    %14 = vsyncpa [#allocation4], 0
    %s15 = scalar_lea.sflag [#allocation4], 1
    %16 = vsyncpa %s15, 0
    %17 = vsyncpa [#allocation6], 0
    %s18 = scalar_lea.sflag [#allocation6], 1
    %19 = vsyncpa %s18, 0
    loop: start=0, step=1, limit=6
    $region2: #{tpu_custom_call.1} parent=1 // loop_pre_header
      _
    $region3: #{tpu_custom_call.1} parent=1 // loop_header
      %s21 = sphi 0, %s25
      %p22 = scmp.ge.s32.totalorder %s21, 6
      %s31 = sphi 0, %s33
      %s34 = sphi 0, %s31
      %s35 = sphi 0, %s34
      %s51 = sphi 0, %s35
      %s55 = sphi 0, %s55
      %s57 = sphi 0, %s55
      %s58 = sphi 0, %s57
      %s72 = sphi 0, %s58
      %s76 = sphi 0, %s76
      %s78 = sphi 0, %s76
      %s79 = sphi 0, %s78
      %s93 = sphi 0, %s79
      %s97 = sphi 0, %s97
      %s99 = sphi 0, %s97
      %s100 = sphi 0, %s99
      %s114 = sphi 0, %s100
      %s118 = sphi 0, %s118
      %s120 = sphi 0, %s118
      %s121 = sphi 0, %s120
      %s135 = sphi 0, %s121
      %s139 = sphi 0, %s139
      %s141 = sphi 0, %s139
      %s142 = sphi 0, %s141
      %s156 = sphi 0, %s142
      %s162 = sphi 0, %s164
      %s165 = sphi 0, %s162
      %s166 = sphi 0, %s165
      %s182 = sphi 0, %s166
      %s188 = sphi 0, %s190
      %s191 = sphi 0, %s188
      %s192 = sphi 0, %s191
      %s208 = sphi 0, %s192
    $region4: #{tpu_custom_call.1} parent=1 // loop_header_branch
      %24 = sbr.rel (%p22) target = $region8
    $region5: #{tpu_custom_call.1} parent=1 // loop_body
      %s26 = ssub.s32 %s21, 1
      %s27 = ssub.s32 %s21, 2
      %s28 = sadd.s32 %s21, 1
      %s29 = ssub.s32 %s21, %s28
      %p30 = scmp.eq.s32.totalorder %s29, 0
      %s32 = sadd.s32 %s31, 1
      %s33 = scalar_select %p30, %s31, %s32
      %p36 = pneg %p30
      %p37 = scmp.eq.s32.totalorder %s21, 3
      %p38 = por %p36, %p37
      %p39 = scmp.ne.s32.totalorder %s31, %s34
      %p40 = scmp.eq.s32.totalorder %s21, 0
      %p41 = por %p39, %p40
      %p42 = scmp.ne.s32.totalorder %s31, %s34
      %p43 = scmp.eq.s32.totalorder %s26, 3
      %p44 = por %p42, %p43
      %p45 = scmp.ne.s32.totalorder %s34, %s35
      %p46 = scmp.eq.s32.totalorder %s26, 0
      %p47 = por %p45, %p46
      %p48 = scmp.ne.s32.totalorder %s34, %s35
      %p49 = scmp.eq.s32.totalorder %s27, 3
      %p50 = por %p48, %p49
      %p52 = scmp.ne.s32.totalorder %s35, %s51
      %p53 = scmp.eq.s32.totalorder %s27, 0
      %p54 = por %p52, %p53
      %s56 = sadd.s32 %s55, 1
      %p59 = scmp.eq.s32.totalorder %s21, 3
      %p60 = scmp.ne.s32.totalorder %s55, %s57
      %p61 = scmp.eq.s32.totalorder %s21, 0
      %p62 = por %p60, %p61
      %p63 = scmp.ne.s32.totalorder %s55, %s57
      %p64 = scmp.eq.s32.totalorder %s26, 3
      %p65 = por %p63, %p64
      %p66 = scmp.ne.s32.totalorder %s57, %s58
      %p67 = scmp.eq.s32.totalorder %s26, 0
      %p68 = por %p66, %p67
      %p69 = scmp.ne.s32.totalorder %s57, %s58
      %p70 = scmp.eq.s32.totalorder %s27, 3
      %p71 = por %p69, %p70
      %p73 = scmp.ne.s32.totalorder %s58, %s72
      %p74 = scmp.eq.s32.totalorder %s27, 0
      %p75 = por %p73, %p74
      %s77 = sadd.s32 %s76, 1
      %p80 = scmp.eq.s32.totalorder %s21, 3
      %p81 = scmp.ne.s32.totalorder %s76, %s78
      %p82 = scmp.eq.s32.totalorder %s21, 0
      %p83 = por %p81, %p82
      %p84 = scmp.ne.s32.totalorder %s76, %s78
      %p85 = scmp.eq.s32.totalorder %s26, 3
      %p86 = por %p84, %p85
      %p87 = scmp.ne.s32.totalorder %s78, %s79
      %p88 = scmp.eq.s32.totalorder %s26, 0
      %p89 = por %p87, %p88
      %p90 = scmp.ne.s32.totalorder %s78, %s79
      %p91 = scmp.eq.s32.totalorder %s27, 3
      %p92 = por %p90, %p91
      %p94 = scmp.ne.s32.totalorder %s79, %s93
      %p95 = scmp.eq.s32.totalorder %s27, 0
      %p96 = por %p94, %p95
      %s98 = sadd.s32 %s97, 1
      %p101 = scmp.eq.s32.totalorder %s21, 3
      %p102 = scmp.ne.s32.totalorder %s97, %s99
      %p103 = scmp.eq.s32.totalorder %s21, 0
      %p104 = por %p102, %p103
      %p105 = scmp.ne.s32.totalorder %s97, %s99
      %p106 = scmp.eq.s32.totalorder %s26, 3
      %p107 = por %p105, %p106
      %p108 = scmp.ne.s32.totalorder %s99, %s100
      %p109 = scmp.eq.s32.totalorder %s26, 0
      %p110 = por %p108, %p109
      %p111 = scmp.ne.s32.totalorder %s99, %s100
      %p112 = scmp.eq.s32.totalorder %s27, 3
      %p113 = por %p111, %p112
      %p115 = scmp.ne.s32.totalorder %s100, %s114
      %p116 = scmp.eq.s32.totalorder %s27, 0
      %p117 = por %p115, %p116
      %s119 = sadd.s32 %s118, 1
      %p122 = scmp.eq.s32.totalorder %s21, 3
      %p123 = scmp.ne.s32.totalorder %s118, %s120
      %p124 = scmp.eq.s32.totalorder %s21, 0
      %p125 = por %p123, %p124
      %p126 = scmp.ne.s32.totalorder %s118, %s120
      %p127 = scmp.eq.s32.totalorder %s26, 3
      %p128 = por %p126, %p127
      %p129 = scmp.ne.s32.totalorder %s120, %s121
      %p130 = scmp.eq.s32.totalorder %s26, 0
      %p131 = por %p129, %p130
      %p132 = scmp.ne.s32.totalorder %s120, %s121
      %p133 = scmp.eq.s32.totalorder %s27, 3
      %p134 = por %p132, %p133
      %p136 = scmp.ne.s32.totalorder %s121, %s135
      %p137 = scmp.eq.s32.totalorder %s27, 0
      %p138 = por %p136, %p137
      %s140 = sadd.s32 %s139, 1
      %p143 = scmp.eq.s32.totalorder %s21, 3
      %p144 = scmp.ne.s32.totalorder %s139, %s141
      %p145 = scmp.eq.s32.totalorder %s21, 0
      %p146 = por %p144, %p145
      %p147 = scmp.ne.s32.totalorder %s139, %s141
      %p148 = scmp.eq.s32.totalorder %s26, 3
      %p149 = por %p147, %p148
      %p150 = scmp.ne.s32.totalorder %s141, %s142
      %p151 = scmp.eq.s32.totalorder %s26, 0
      %p152 = por %p150, %p151
      %p153 = scmp.ne.s32.totalorder %s141, %s142
      %p154 = scmp.eq.s32.totalorder %s27, 3
      %p155 = por %p153, %p154
      %p157 = scmp.ne.s32.totalorder %s142, %s156
      %p158 = scmp.eq.s32.totalorder %s27, 0
      %p159 = por %p157, %p158
      %s160 = ssub.s32 %s21, %s28
      %p161 = scmp.eq.s32.totalorder %s160, 0
      %s163 = sadd.s32 %s162, 1
      %s164 = scalar_select %p161, %s162, %s163
      %p167 = pneg %p161
      %p168 = scmp.eq.s32.totalorder %s21, 3
      %p169 = por %p167, %p168
      %p170 = scmp.ne.s32.totalorder %s162, %s165
      %p171 = scmp.eq.s32.totalorder %s21, 0
      %p172 = por %p170, %p171
      %p173 = scmp.ne.s32.totalorder %s162, %s165
      %p174 = scmp.eq.s32.totalorder %s26, 3
      %p175 = por %p173, %p174
      %p176 = scmp.ne.s32.totalorder %s165, %s166
      %p177 = scmp.eq.s32.totalorder %s26, 0
      %p178 = por %p176, %p177
      %p179 = scmp.ne.s32.totalorder %s165, %s166
      %p180 = scmp.eq.s32.totalorder %s27, 3
      %p181 = por %p179, %p180
      %p183 = scmp.ne.s32.totalorder %s166, %s182
      %p184 = scmp.eq.s32.totalorder %s27, 0
      %p185 = por %p183, %p184
      %s186 = ssub.s32 %s21, %s28
      %p187 = scmp.eq.s32.totalorder %s186, 0
      %s189 = sadd.s32 %s188, 1
      %s190 = scalar_select %p187, %s188, %s189
      %p193 = pneg %p187
      %p194 = scmp.eq.s32.totalorder %s21, 3
      %p195 = por %p193, %p194
      %p196 = scmp.ne.s32.totalorder %s188, %s191
      %p197 = scmp.eq.s32.totalorder %s21, 0
      %p198 = por %p196, %p197
      %p199 = scmp.ne.s32.totalorder %s188, %s191
      %p200 = scmp.eq.s32.totalorder %s26, 3
      %p201 = por %p199, %p200
      %p202 = scmp.ne.s32.totalorder %s191, %s192
      %p203 = scmp.eq.s32.totalorder %s26, 0
      %p204 = por %p202, %p203
      %p205 = scmp.ne.s32.totalorder %s191, %s192
      %p206 = scmp.eq.s32.totalorder %s27, 3
      %p207 = por %p205, %p206
      %p209 = scmp.ne.s32.totalorder %s192, %s208
      %p210 = scmp.eq.s32.totalorder %s27, 0
      %p211 = por %p209, %p210
      %p212 = scmp.le.s32.totalorder 1, %s21
      %p213 = scmp.lt.s32.totalorder %s21, 5
      %p214 = pnand %p212, %p213
      %p215 = pneg %p214
      // Predicated region
      $region9: #{tpu_custom_call.1} parent=5 // pred_check
        _
      $region10: #{tpu_custom_call.1} parent=5 // pred_check_branch
        %217 = sbr.rel (%p214) target = $region12
      $region11: #{tpu_custom_call.1} parent=5 // pred_region
        %s218 = ssub.s32 %s21, 1
        // Predicated region
        $region13: #{tpu_custom_call.1} parent=11 // pred_check
          %p219 = pneg %p68
        $region14: #{tpu_custom_call.1} parent=11 // pred_check_branch
          %221 = sbr.rel (%p219) target = $region16
        $region15: #{tpu_custom_call.1} parent=11 // pred_region
          _
        $region16: #{tpu_custom_call.1} parent=11 // pred_fallthru
          _
        // Predicated region
        $region17: #{tpu_custom_call.1} parent=11 // pred_check
          %p222 = pneg %p89
        $region18: #{tpu_custom_call.1} parent=11 // pred_check_branch
          %224 = sbr.rel (%p222) target = $region20
        $region19: #{tpu_custom_call.1} parent=11 // pred_region
          _
        $region20: #{tpu_custom_call.1} parent=11 // pred_fallthru
          _
        // Predicated region
        $region21: #{tpu_custom_call.1} parent=11 // pred_check
          %p225 = pneg %p110
        $region22: #{tpu_custom_call.1} parent=11 // pred_check_branch
          %227 = sbr.rel (%p225) target = $region24
        $region23: #{tpu_custom_call.1} parent=11 // pred_region
          _
        $region24: #{tpu_custom_call.1} parent=11 // pred_fallthru
          _
        // Predicated region
        $region25: #{tpu_custom_call.1} parent=11 // pred_check
          %p228 = pneg %p131
        $region26: #{tpu_custom_call.1} parent=11 // pred_check_branch
          %230 = sbr.rel (%p228) target = $region28
        $region27: #{tpu_custom_call.1} parent=11 // pred_region
          _
        $region28: #{tpu_custom_call.1} parent=11 // pred_fallthru
          _
        // Predicated region
        $region29: #{tpu_custom_call.1} parent=11 // pred_check
          %p231 = pneg %p152
        $region30: #{tpu_custom_call.1} parent=11 // pred_check_branch
          %233 = sbr.rel (%p231) target = $region32
        $region31: #{tpu_custom_call.1} parent=11 // pred_region
          _
        $region32: #{tpu_custom_call.1} parent=11 // pred_fallthru
          _
      $region12: #{tpu_custom_call.1} parent=5 // pred_fallthru
        _
      %p234 = scmp.lt.s32.totalorder %s21, 4
      // Predicated region
      $region33: #{tpu_custom_call.1} parent=5 // pred_check
        %p235 = pneg %p234
      $region34: #{tpu_custom_call.1} parent=5 // pred_check_branch
        %237 = sbr.rel (%p235) target = $region36
      $region35: #{tpu_custom_call.1} parent=5 // pred_region
        // Predicated region
        $region37: #{tpu_custom_call.1} parent=35 // pred_check
          %p238 = pneg %p41
        $region38: #{tpu_custom_call.1} parent=35 // pred_check_branch
          %240 = sbr.rel (%p238) target = $region40
        $region39: #{tpu_custom_call.1} parent=35 // pred_region
          %s241 = smul.u32 32, %s21
          %p242 = scmp.lt.s32.totalorder %s241, 127
          %s243 = scalar_select %p242, %s241, 127
          %s244 = smul.addr %s243, 8
          %s245 = scalar_lea.vmem %s0, %s244
          %s246 = smul.u32 32, %s21
        $region40: #{tpu_custom_call.1} parent=35 // pred_fallthru
          _
      $region36: #{tpu_custom_call.1} parent=5 // pred_fallthru
        _
      %p247 = scmp.le.s32.totalorder 1, %s21
      %p248 = scmp.lt.s32.totalorder %s21, 5
      %p249 = pnand %p247, %p248
      %p250 = pneg %p249
      // Predicated region
      $region41: #{tpu_custom_call.1} parent=5 // pred_check
        _
      $region42: #{tpu_custom_call.1} parent=5 // pred_check_branch
        %252 = sbr.rel (%p249) target = $region44
      $region43: #{tpu_custom_call.1} parent=5 // pred_region
        %s253 = ssub.s32 %s21, 1
        %s254 = smul.u32 32, %s26
        %p255 = scmp.lt.s32.totalorder %s254, 127
        %s256 = scalar_select %p255, %s254, 127
        %s257 = smul.addr %s256, 8
        %s258 = scalar_lea.vmem %s0, %s257
        %p259 = pneg %p47
        %p260 = pneg %p44
        %p261 = pneg %p68
        %p262 = pneg %p65
        %p263 = pneg %p89
        %p264 = pneg %p86
        %p265 = pneg %p110
        %p266 = pneg %p107
        %p267 = pneg %p131
        %p268 = pneg %p128
        %p269 = pneg %p152
        %p270 = pneg %p149
        %p271 = pneg %p178
        %p272 = pneg %p175
        %s273 = sand.u32 %s165, 1
        %s274 = scalar_lea.sflag [#allocation4], %s273
        %s275 = sand.u32 %s165, 1
        %s276 = smul.addr %s275, 2
        %s277 = scalar_lea.vmem [#allocation3], %s276
        %p278 = pneg %p204
        %p279 = pneg %p201
        %s280 = sand.u32 %s191, 1
        %s281 = scalar_lea.sflag [#allocation6], %s280
        %s282 = sand.u32 %s191, 1
        %s283 = smul.addr %s282, 2
        %s284 = scalar_lea.vmem [#allocation5], %s283
        %s285 = smul.u32 32, %s26
        %p286 = scmp.lt.s32.totalorder %s285, 127
        %s287 = scalar_select %p286, %s285, 127
        %s288 = smul.addr %s287, 8
        %s289 = scalar_lea.vmem %s0, %s288
        %s290 = smul.u32 32, %s26
        %v291 = vld [vmem:[%s289] sm:$0xff]
        %v292 = vld [vmem:[%s289 + $0x8] sm:$0xff]
        %v293 = vld [vmem:[%s289 + $0x10] sm:$0xff]
        %v294 = vld [vmem:[%s289 + $0x18] sm:$0xff]
        %v295 = vld [vmem:[%s289 + $0x20] sm:$0xff]
        %v296 = vld [vmem:[%s289 + $0x28] sm:$0xff]
        %v297 = vld [vmem:[%s289 + $0x30] sm:$0xff]
        %v298 = vld [vmem:[%s289 + $0x38] sm:$0xff]
        %v299 = vld [vmem:[%s289 + $0x40] sm:$0xff]
        %v300 = vld [vmem:[%s289 + $0x48] sm:$0xff]
        %v301 = vld [vmem:[%s289 + $0x50] sm:$0xff]
        %v302 = vld [vmem:[%s289 + $0x58] sm:$0xff]
        %v303 = vld [vmem:[%s289 + $0x60] sm:$0xff]
        %v304 = vld [vmem:[%s289 + $0x68] sm:$0xff]
        %v305 = vld [vmem:[%s289 + $0x70] sm:$0xff]
        %v306 = vld [vmem:[%s289 + $0x78] sm:$0xff]
        %v307 = vld [vmem:[%s289 + $0x80] sm:$0xff]
        %v308 = vld [vmem:[%s289 + $0x88] sm:$0xff]
        %v309 = vld [vmem:[%s289 + $0x90] sm:$0xff]
        %v310 = vld [vmem:[%s289 + $0x98] sm:$0xff]
        %v311 = vld [vmem:[%s289 + $0xa0] sm:$0xff]
        %v312 = vld [vmem:[%s289 + $0xa8] sm:$0xff]
        %v313 = vld [vmem:[%s289 + $0xb0] sm:$0xff]
        %v314 = vld [vmem:[%s289 + $0xb8] sm:$0xff]
        %v315 = vld [vmem:[%s289 + $0xc0] sm:$0xff]
        %v316 = vld [vmem:[%s289 + $0xc8] sm:$0xff]
        %v317 = vld [vmem:[%s289 + $0xd0] sm:$0xff]
        %v318 = vld [vmem:[%s289 + $0xd8] sm:$0xff]
        %v319 = vld [vmem:[%s289 + $0xe0] sm:$0xff]
        %v320 = vld [vmem:[%s289 + $0xe8] sm:$0xff]
        %v321 = vld [vmem:[%s289 + $0xf0] sm:$0xff]
        %v322 = vld [vmem:[%s289 + $0xf8] sm:$0xff]
        %v323 = vld [vmem:[%s1] sm:$0xff]
        %v324 = vld [vmem:[%s1 + $0x8] sm:$0xff]
        %v325 = vld [vmem:[%s2] sm:$0x1]
        %v327 = vlaneseq
        %v328 = vshrl.u32 %v327, 7
        %v329 = vsub.s32 0, %v328
        %v330 = vrot.slane %v325, %v329
        %vm332 = vcmask 130048
        %v334 = vsel %vm332, %v291, 0
        %v337 = vsel %vm332, %v292, 0
        %v340 = vsel %vm332, %v293, 0
        %v343 = vsel %vm332, %v294, 0
        %v346 = vsel %vm332, %v295, 0
        %v349 = vsel %vm332, %v296, 0
        %v352 = vsel %vm332, %v297, 0
        %v355 = vsel %vm332, %v298, 0
        %v358 = vsel %vm332, %v299, 0
        %v361 = vsel %vm332, %v300, 0
        %v364 = vsel %vm332, %v301, 0
        %v367 = vsel %vm332, %v302, 0
        %v370 = vsel %vm332, %v303, 0
        %v373 = vsel %vm332, %v304, 0
        %v376 = vsel %vm332, %v305, 0
        %v379 = vsel %vm332, %v306, 0
        %v382 = vsel %vm332, %v307, 0
        %v385 = vsel %vm332, %v308, 0
        %v388 = vsel %vm332, %v309, 0
        %v391 = vsel %vm332, %v310, 0
        %v394 = vsel %vm332, %v311, 0
        %v397 = vsel %vm332, %v312, 0
        %v400 = vsel %vm332, %v313, 0
        %v403 = vsel %vm332, %v314, 0
        %v406 = vsel %vm332, %v315, 0
        %v409 = vsel %vm332, %v316, 0
        %v412 = vsel %vm332, %v317, 0
        %v415 = vsel %vm332, %v318, 0
        %v418 = vsel %vm332, %v319, 0
        %v421 = vsel %vm332, %v320, 0
        %v424 = vsel %vm332, %v321, 0
        %v427 = vsel %vm332, %v322, 0
        %429 = vmatprep.subr.mxu0 0.0
        %430 = vmatpush1.msra.mxu0 0.0
        %431 = vmatprep.subr.mxu0 0.0
        %432 = vmatpush1.msra.mxu0 0.0
        %433 = vmatprep.subr.mxu0 0.0
        %434 = vmatpush1.msra.mxu0 0.0
        %435 = vmatprep.subr.mxu0 0.0
        %436 = vmatpush1.msra.mxu0 0.0
        %437 = vmatprep.subr.mxu0 0.0
        %438 = vmatpush1.msra.mxu0 0.0
        %439 = vmatprep.subr.mxu0 0.0
        %440 = vmatpush1.msra.mxu0 0.0
        %441 = vmatprep.subr.mxu0 0.0
        %442 = vmatpush1.msra.mxu0 0.0
        %443 = vmatprep.subr.mxu0 0.0
        %444 = vmatpush1.msra.mxu0 0.0
        %445 = vmatprep.subr.mxu0 0.0
        %446 = vmatpush1.msra.mxu0 0.0
        %447 = vmatprep.subr.mxu0 0.0
        %448 = vmatpush1.msra.mxu0 0.0
        %449 = vmatprep.subr.mxu0 0.0
        %450 = vmatpush1.msra.mxu0 0.0
        %451 = vmatprep.subr.mxu0 0.0
        %452 = vmatpush1.msra.mxu0 0.0
        %453 = vmatprep.subr.mxu0 0.0
        %454 = vmatpush1.msra.mxu0 0.0
        %455 = vmatprep.subr.mxu0 0.0
        %456 = vmatpush1.msra.mxu0 0.0
        %457 = vmatprep.subr.mxu0 0.0
        %458 = vmatpush1.msra.mxu0 %v324
        %459 = vmatprep.subr.mxu0 0.0
        %460 = vmatpush1.msra.mxu0 %v323
        %461 = vmatprep.subr.mxu0 0.0
        %462 = vmatpush2.msra.mxu0 0.0
        %463 = vmatprep.subr.mxu0 0.0
        %464 = vmatpush2.msra.mxu0 0.0
        %465 = vmatprep.subr.mxu0 0.0
        %466 = vmatpush2.msra.mxu0 0.0
        %467 = vmatprep.subr.mxu0 0.0
        %468 = vmatpush2.msra.mxu0 0.0
        %469 = vmatprep.subr.mxu0 0.0
        %470 = vmatpush2.msra.mxu0 0.0
        %471 = vmatprep.subr.mxu0 0.0
        %472 = vmatpush2.msra.mxu0 0.0
        %473 = vmatprep.subr.mxu0 0.0
        %474 = vmatpush2.msra.mxu0 0.0
        %475 = vmatprep.subr.mxu0 0.0
        %476 = vmatpush2.msra.mxu0 0.0
        %477 = vmatprep.subr.mxu0 0.0
        %478 = vmatpush2.msra.mxu0 0.0
        %479 = vmatprep.subr.mxu0 0.0
        %480 = vmatpush2.msra.mxu0 0.0
        %481 = vmatprep.subr.mxu0 0.0
        %482 = vmatpush2.msra.mxu0 0.0
        %483 = vmatprep.subr.mxu0 0.0
        %484 = vmatpush2.msra.mxu0 0.0
        %485 = vmatprep.subr.mxu0 0.0
        %486 = vmatpush2.msra.mxu0 0.0
        %487 = vmatprep.subr.mxu0 0.0
        %488 = vmatpush2.msra.mxu0 0.0
        %489 = vmatprep.subr.mxu0 0.0
        %490 = vmatpush2.msra.mxu0 0.0
        %491 = vmatprep.subr.mxu0 0.0
        %492 = vmatpush2.msra.mxu0 0.0
        %493 = vmatprep.mubr.f32.mxu0 0.0
        %494 = vmatmul.mubr.f32.gmra.mxu0 %v334
        %v495 = vpop.f32.mrf.mxu0
        %v496 = vadd.f32 %v330, %v495
        %v497 = vpop.f32.mrf.mxu0
        %498 = vmatprep.mubr.f32.mxu0 0.0
        %499 = vmatmul.mubr.f32.gmra.mxu0 %v337
        %v500 = vpop.f32.mrf.mxu0
        %v501 = vadd.f32 %v330, %v500
        %v502 = vpop.f32.mrf.mxu0
        %503 = vmatprep.mubr.f32.mxu0 0.0
        %504 = vmatmul.mubr.f32.gmra.mxu0 %v340
        %v505 = vpop.f32.mrf.mxu0
        %v506 = vadd.f32 %v330, %v505
        %v507 = vpop.f32.mrf.mxu0
        %508 = vmatprep.mubr.f32.mxu0 0.0
        %509 = vmatmul.mubr.f32.gmra.mxu0 %v343
        %v510 = vpop.f32.mrf.mxu0
        %v511 = vadd.f32 %v330, %v510
        %v512 = vpop.f32.mrf.mxu0
        %513 = vmatprep.mubr.f32.mxu0 0.0
        %514 = vmatmul.mubr.f32.gmra.mxu0 %v346
        %v515 = vpop.f32.mrf.mxu0
        %v516 = vadd.f32 %v330, %v515
        %v517 = vpop.f32.mrf.mxu0
        %518 = vmatprep.mubr.f32.mxu0 0.0
        %519 = vmatmul.mubr.f32.gmra.mxu0 %v349
        %v520 = vpop.f32.mrf.mxu0
        %v521 = vadd.f32 %v330, %v520
        %v522 = vpop.f32.mrf.mxu0
        %523 = vmatprep.mubr.f32.mxu0 0.0
        %524 = vmatmul.mubr.f32.gmra.mxu0 %v352
        %v525 = vpop.f32.mrf.mxu0
        %v526 = vadd.f32 %v330, %v525
        %v527 = vpop.f32.mrf.mxu0
        %528 = vmatprep.mubr.f32.mxu0 0.0
        %529 = vmatmul.mubr.f32.gmra.mxu0 %v355
        %v530 = vpop.f32.mrf.mxu0
        %v531 = vadd.f32 %v330, %v530
        %v532 = vpop.f32.mrf.mxu0
        %533 = vmatprep.mubr.f32.mxu0 0.0
        %534 = vmatmul.mubr.f32.gmra.mxu0 %v358
        %v535 = vpop.f32.mrf.mxu0
        %v536 = vadd.f32 %v330, %v535
        %v537 = vpop.f32.mrf.mxu0
        %538 = vmatprep.mubr.f32.mxu0 0.0
        %539 = vmatmul.mubr.f32.gmra.mxu0 %v361
        %v540 = vpop.f32.mrf.mxu0
        %v541 = vadd.f32 %v330, %v540
        %v542 = vpop.f32.mrf.mxu0
        %543 = vmatprep.mubr.f32.mxu0 0.0
        %544 = vmatmul.mubr.f32.gmra.mxu0 %v364
        %v545 = vpop.f32.mrf.mxu0
        %v546 = vadd.f32 %v330, %v545
        %v547 = vpop.f32.mrf.mxu0
        %548 = vmatprep.mubr.f32.mxu0 0.0
        %549 = vmatmul.mubr.f32.gmra.mxu0 %v367
        %v550 = vpop.f32.mrf.mxu0
        %v551 = vadd.f32 %v330, %v550
        %v552 = vpop.f32.mrf.mxu0
        %553 = vmatprep.mubr.f32.mxu0 0.0
        %554 = vmatmul.mubr.f32.gmra.mxu0 %v370
        %v555 = vpop.f32.mrf.mxu0
        %v556 = vadd.f32 %v330, %v555
        %v557 = vpop.f32.mrf.mxu0
        %558 = vmatprep.mubr.f32.mxu0 0.0
        %559 = vmatmul.mubr.f32.gmra.mxu0 %v373
        %v560 = vpop.f32.mrf.mxu0
        %v561 = vadd.f32 %v330, %v560
        %v562 = vpop.f32.mrf.mxu0
        %563 = vmatprep.mubr.f32.mxu0 0.0
        %564 = vmatmul.mubr.f32.gmra.mxu0 %v376
        %v565 = vpop.f32.mrf.mxu0
        %v566 = vadd.f32 %v330, %v565
        %v567 = vpop.f32.mrf.mxu0
        %568 = vmatprep.mubr.f32.mxu0 0.0
        %569 = vmatmul.mubr.f32.gmra.mxu0 %v379
        %v570 = vpop.f32.mrf.mxu0
        %v571 = vadd.f32 %v330, %v570
        %v572 = vpop.f32.mrf.mxu0
        %573 = vmatprep.mubr.f32.mxu0 0.0
        %574 = vmatmul.mubr.f32.gmra.mxu0 %v382
        %v575 = vpop.f32.mrf.mxu0
        %v576 = vadd.f32 %v330, %v575
        %v577 = vpop.f32.mrf.mxu0
        %578 = vmatprep.mubr.f32.mxu0 0.0
        %579 = vmatmul.mubr.f32.gmra.mxu0 %v385
        %v580 = vpop.f32.mrf.mxu0
        %v581 = vadd.f32 %v330, %v580
        %v582 = vpop.f32.mrf.mxu0
        %583 = vmatprep.mubr.f32.mxu0 0.0
        %584 = vmatmul.mubr.f32.gmra.mxu0 %v388
        %v585 = vpop.f32.mrf.mxu0
        %v586 = vadd.f32 %v330, %v585
        %v587 = vpop.f32.mrf.mxu0
        %588 = vmatprep.mubr.f32.mxu0 0.0
        %589 = vmatmul.mubr.f32.gmra.mxu0 %v391
        %v590 = vpop.f32.mrf.mxu0
        %v591 = vadd.f32 %v330, %v590
        %v592 = vpop.f32.mrf.mxu0
        %593 = vmatprep.mubr.f32.mxu0 0.0
        %594 = vmatmul.mubr.f32.gmra.mxu0 %v394
        %v595 = vpop.f32.mrf.mxu0
        %v596 = vadd.f32 %v330, %v595
        %v597 = vpop.f32.mrf.mxu0
        %598 = vmatprep.mubr.f32.mxu0 0.0
        %599 = vmatmul.mubr.f32.gmra.mxu0 %v397
        %v600 = vpop.f32.mrf.mxu0
        %v601 = vadd.f32 %v330, %v600
        %v602 = vpop.f32.mrf.mxu0
        %603 = vmatprep.mubr.f32.mxu0 0.0
        %604 = vmatmul.mubr.f32.gmra.mxu0 %v400
        %v605 = vpop.f32.mrf.mxu0
        %v606 = vadd.f32 %v330, %v605
        %v607 = vpop.f32.mrf.mxu0
        %608 = vmatprep.mubr.f32.mxu0 0.0
        %609 = vmatmul.mubr.f32.gmra.mxu0 %v403
        %v610 = vpop.f32.mrf.mxu0
        %v611 = vadd.f32 %v330, %v610
        %v612 = vpop.f32.mrf.mxu0
        %613 = vmatprep.mubr.f32.mxu0 0.0
        %614 = vmatmul.mubr.f32.gmra.mxu0 %v406
        %v615 = vpop.f32.mrf.mxu0
        %v616 = vadd.f32 %v330, %v615
        %v617 = vpop.f32.mrf.mxu0
        %618 = vmatprep.mubr.f32.mxu0 0.0
        %619 = vmatmul.mubr.f32.gmra.mxu0 %v409
        %v620 = vpop.f32.mrf.mxu0
        %v621 = vadd.f32 %v330, %v620
        %v622 = vpop.f32.mrf.mxu0
        %623 = vmatprep.mubr.f32.mxu0 0.0
        %624 = vmatmul.mubr.f32.gmra.mxu0 %v412
        %v625 = vpop.f32.mrf.mxu0
        %v626 = vadd.f32 %v330, %v625
        %v627 = vpop.f32.mrf.mxu0
        %628 = vmatprep.mubr.f32.mxu0 0.0
        %629 = vmatmul.mubr.f32.gmra.mxu0 %v415
        %v630 = vpop.f32.mrf.mxu0
        %v631 = vadd.f32 %v330, %v630
        %v632 = vpop.f32.mrf.mxu0
        %633 = vmatprep.mubr.f32.mxu0 0.0
        %634 = vmatmul.mubr.f32.gmra.mxu0 %v418
        %v635 = vpop.f32.mrf.mxu0
        %v636 = vadd.f32 %v330, %v635
        %v637 = vpop.f32.mrf.mxu0
        %638 = vmatprep.mubr.f32.mxu0 0.0
        %639 = vmatmul.mubr.f32.gmra.mxu0 %v421
        %v640 = vpop.f32.mrf.mxu0
        %v641 = vadd.f32 %v330, %v640
        %v642 = vpop.f32.mrf.mxu0
        %643 = vmatprep.mubr.f32.mxu0 0.0
        %644 = vmatmul.mubr.f32.gmra.mxu0 %v424
        %v645 = vpop.f32.mrf.mxu0
        %v646 = vadd.f32 %v330, %v645
        %v647 = vpop.f32.mrf.mxu0
        %648 = vmatprep.mubr.f32.mxu0 0.0
        %649 = vmatmul.mubr.f32.gmra.mxu0 %v427
        %v650 = vpop.f32.mrf.mxu0
        %v651 = vadd.f32 %v330, %v650
        %v652 = vpop.f32.mrf.mxu0
        %653 = vdwg.mxu0
        %v654 = vmax.f32 %v496, 0.0
        %v655 = vmax.f32 %v501, 0.0
        %v656 = vmax.f32 %v506, 0.0
        %v657 = vmax.f32 %v511, 0.0
        %v658 = vmax.f32 %v516, 0.0
        %v659 = vmax.f32 %v521, 0.0
        %v660 = vmax.f32 %v526, 0.0
        %v661 = vmax.f32 %v531, 0.0
        %v662 = vmax.f32 %v536, 0.0
        %v663 = vmax.f32 %v541, 0.0
        %v664 = vmax.f32 %v546, 0.0
        %v665 = vmax.f32 %v551, 0.0
        %v666 = vmax.f32 %v556, 0.0
        %v667 = vmax.f32 %v561, 0.0
        %v668 = vmax.f32 %v566, 0.0
        %v669 = vmax.f32 %v571, 0.0
        %v670 = vmax.f32 %v576, 0.0
        %v671 = vmax.f32 %v581, 0.0
        %v672 = vmax.f32 %v586, 0.0
        %v673 = vmax.f32 %v591, 0.0
        %v674 = vmax.f32 %v596, 0.0
        %v675 = vmax.f32 %v601, 0.0
        %v676 = vmax.f32 %v606, 0.0
        %v677 = vmax.f32 %v611, 0.0
        %v678 = vmax.f32 %v616, 0.0
        %v679 = vmax.f32 %v621, 0.0
        %v680 = vmax.f32 %v626, 0.0
        %v681 = vmax.f32 %v631, 0.0
        %v682 = vmax.f32 %v636, 0.0
        %v683 = vmax.f32 %v641, 0.0
        %v684 = vmax.f32 %v646, 0.0
        %v685 = vmax.f32 %v651, 0.0
        %v686 = vld [vmem:[%s3] sm:$0x1]
        %s687 = sld [smem:[#allocation2]]
        %v688 = vstv %s687
        %vm689 = vcmask 261120
        %v691 = vsel %vm689, %v686, 0
        %v694 = vsel %vm689, %v654, 0
        %v697 = vsel %vm689, %v655, 0
        %v700 = vsel %vm689, %v656, 0
        %v703 = vsel %vm689, %v657, 0
        %v706 = vsel %vm689, %v658, 0
        %v709 = vsel %vm689, %v659, 0
        %v712 = vsel %vm689, %v660, 0
        %v715 = vsel %vm689, %v661, 0
        %v718 = vsel %vm689, %v662, 0
        %v721 = vsel %vm689, %v663, 0
        %v724 = vsel %vm689, %v664, 0
        %v727 = vsel %vm689, %v665, 0
        %v730 = vsel %vm689, %v666, 0
        %v733 = vsel %vm689, %v667, 0
        %v736 = vsel %vm689, %v668, 0
        %v739 = vsel %vm689, %v669, 0
        %v742 = vsel %vm689, %v670, 0
        %v745 = vsel %vm689, %v671, 0
        %v748 = vsel %vm689, %v672, 0
        %v751 = vsel %vm689, %v673, 0
        %v754 = vsel %vm689, %v674, 0
        %v757 = vsel %vm689, %v675, 0
        %v760 = vsel %vm689, %v676, 0
        %v763 = vsel %vm689, %v677, 0
        %v766 = vsel %vm689, %v678, 0
        %v769 = vsel %vm689, %v679, 0
        %v772 = vsel %vm689, %v680, 0
        %v775 = vsel %vm689, %v681, 0
        %v778 = vsel %vm689, %v682, 0
        %v781 = vsel %vm689, %v683, 0
        %v784 = vsel %vm689, %v684, 0
        %v787 = vsel %vm689, %v685, 0
        %789 = vmatprep.subr.mxu0 0.0
        %790 = vmatpush1.xpose.msra.mxu0 %v739
        %791 = vmatprep.subr.mxu0 0.0
        %792 = vmatpush1.xpose.msra.mxu0 %v736
        %793 = vmatprep.subr.mxu0 0.0
        %794 = vmatpush1.xpose.msra.mxu0 %v733
        %795 = vmatprep.subr.mxu0 0.0
        %796 = vmatpush1.xpose.msra.mxu0 %v730
        %797 = vmatprep.subr.mxu0 0.0
        %798 = vmatpush1.xpose.msra.mxu0 %v727
        %799 = vmatprep.subr.mxu0 0.0
        %800 = vmatpush1.xpose.msra.mxu0 %v724
        %801 = vmatprep.subr.mxu0 0.0
        %802 = vmatpush1.xpose.msra.mxu0 %v721
        %803 = vmatprep.subr.mxu0 0.0
        %804 = vmatpush1.xpose.msra.mxu0 %v718
        %805 = vmatprep.subr.mxu0 0.0
        %806 = vmatpush1.xpose.msra.mxu0 %v715
        %807 = vmatprep.subr.mxu0 0.0
        %808 = vmatpush1.xpose.msra.mxu0 %v712
        %809 = vmatprep.subr.mxu0 0.0
        %810 = vmatpush1.xpose.msra.mxu0 %v709
        %811 = vmatprep.subr.mxu0 0.0
        %812 = vmatpush1.xpose.msra.mxu0 %v706
        %813 = vmatprep.subr.mxu0 0.0
        %814 = vmatpush1.xpose.msra.mxu0 %v703
        %815 = vmatprep.subr.mxu0 0.0
        %816 = vmatpush1.xpose.msra.mxu0 %v700
        %817 = vmatprep.subr.mxu0 0.0
        %818 = vmatpush1.xpose.msra.mxu0 %v697
        %819 = vmatprep.subr.mxu0 0.0
        %820 = vmatpush1.xpose.msra.mxu0 %v694
        %821 = vmatprep.subr.mxu0 0.0
        %822 = vmatpush2.xpose.msra.mxu0 %v787
        %823 = vmatprep.subr.mxu0 0.0
        %824 = vmatpush2.xpose.msra.mxu0 %v784
        %825 = vmatprep.subr.mxu0 0.0
        %826 = vmatpush2.xpose.msra.mxu0 %v781
        %827 = vmatprep.subr.mxu0 0.0
        %828 = vmatpush2.xpose.msra.mxu0 %v778
        %829 = vmatprep.subr.mxu0 0.0
        %830 = vmatpush2.xpose.msra.mxu0 %v775
        %831 = vmatprep.subr.mxu0 0.0
        %832 = vmatpush2.xpose.msra.mxu0 %v772
        %833 = vmatprep.subr.mxu0 0.0
        %834 = vmatpush2.xpose.msra.mxu0 %v769
        %835 = vmatprep.subr.mxu0 0.0
        %836 = vmatpush2.xpose.msra.mxu0 %v766
        %837 = vmatprep.subr.mxu0 0.0
        %838 = vmatpush2.xpose.msra.mxu0 %v763
        %839 = vmatprep.subr.mxu0 0.0
        %840 = vmatpush2.xpose.msra.mxu0 %v760
        %841 = vmatprep.subr.mxu0 0.0
        %842 = vmatpush2.xpose.msra.mxu0 %v757
        %843 = vmatprep.subr.mxu0 0.0
        %844 = vmatpush2.xpose.msra.mxu0 %v754
        %845 = vmatprep.subr.mxu0 0.0
        %846 = vmatpush2.xpose.msra.mxu0 %v751
        %847 = vmatprep.subr.mxu0 0.0
        %848 = vmatpush2.xpose.msra.mxu0 %v748
        %849 = vmatprep.subr.mxu0 0.0
        %850 = vmatpush2.xpose.msra.mxu0 %v745
        %851 = vmatprep.subr.mxu0 0.0
        %852 = vmatpush2.xpose.msra.mxu0 %v742
        %853 = vmatprep.mubr.f32.mxu0 0.0
        %854 = vmatmul.mubr.f32.gmra.mxu0 %v691
        %v855 = vpop.f32.mrf.mxu0
        %v856 = vadd.f32 %v688, %v855
        %v857 = vpop.f32.mrf.mxu0
        %v858 = vadd.f32 %v688, %v857
        %859 = vdwg.mxu0
        %v862 = vcombine.low %v856, %v858
        %v864 = vunpack.c.l.s4 1966171168
        %v865 = vunpack.c.0.s8 %v864
        %v866 = vlaneseq
        %v867 = vshrl.u32 %v866, 7
        %v868 = vsub.s32 %v865, %v867
        %v869 = vrot.slane %v862, %v868
        %v871 = vunpack.c.l.s4 1966171168
        %v872 = vunpack.c.0.s8 %v871
        %v873 = vlaneseq
        %v874 = vshrl.u32 %v873, 7
        %v875 = vsub.s32 %v872, %v874
        %v876 = vrot.slane %v869, %v875
        %v878 = vlaneseq
        %vm879 = vcmp.ge.s32.totalorder %v878, 0
        %vm880 = vcmp.lt.s32.totalorder %v878, 256
        %vm881 = vmand %vm879, %vm880
        %882 = vst.msk [vmem:[%s277] sm:$0x3] %vm881, %v876
        %v883 = vmax.f32 %v856, 0.0
        %v884 = vmax.f32 %v858, 0.0
        %v885 = vand.u32 2147483647, %v856
        %v886 = vand.u32 2147483647, %v858
        %v887 = vsub.f32 0.0, %v885
        %v888 = vsub.f32 0.0, %v886
        %v889 = vmul.f32 %v887, 1.442695
        %v890 = vpow.pop %v889
        %v891 = vmul.f32 %v888, 1.442695
        %v892 = vpow.pop %v891
        %v893 = vadd.f32 %v890, 1.0
        %v894 = vadd.f32 %v892, 1.0
        %v895 = vlog2.pop %v893
        %v896 = vmul.f32 %v895, 0.6931472
        %v897 = vlog2.pop %v894
        %v898 = vmul.f32 %v897, 0.6931472
        %v899 = vadd.f32 %v883, %v896
        %v900 = vadd.f32 %v884, %v898
        %901 = vrot.lane.b32.xlu0 %v899, 1
        %v902 = vpop.permute.xlu0 %901
        %903 = vrot.lane.b32.xlu0 %v900, 1
        %v904 = vpop.permute.xlu0 %903
        %v905 = vlaneseq
        %v906 = vand.u32 %v905, 127
        %vm907 = vcmp.lt.s32.totalorder %v906, 1
        %v908 = vsel %vm907, %v902, %v904
        %v909 = vsel %vm907, %v904, %v902
        %v910 = vadd.f32 %v899, %v909
        %v911 = vadd.f32 %v900, %v908
        %v912 = vmul.f32 %v910, 0.5
        %v913 = vmul.f32 %v911, 0.5
        %v914 = vld [vmem:[%s4] sm:$0x3]
        %v916 = vlaneseq
        %v917 = vshrl.u32 %v916, 7
        %v918 = vsub.s32 0, %v917
        %v919 = vrot.slane %v914, %v918
        %v920 = vlaneseq
        %v921 = vshrl.u32 %v920, 7
        %v922 = vsub.s32 1, %v921
        %v923 = vrot.slane %v914, %v922
        %v926 = vmul.f32 %v912, %v919
        %v927 = vmul.f32 %v913, %v923
        %v928 = vadd.s32 %v906, 128
        %v929 = vand.u32 %v906, 15
        %v930 = vand.u32 %v928, 15
        %vm931 = vcmp.ge.s32.totalorder %v929, 1
        %vm932 = vcmp.ge.s32.totalorder %v930, 1
        %933 = vrot.lane.b32.xlu0 %v926, 1
        %v934 = vpop.permute.xlu0 %933
        %935 = vrot.lane.b32.xlu0 %v927, 1
        %v936 = vpop.permute.xlu0 %935
        %v937 = vsel %vm907, %v934, %v936
        %v938 = vsel %vm907, %v936, %v934
        %v939 = vsel %vm931, %v938, 0.0
        %v940 = vsel %vm932, %v937, 0.0
        %v941 = vadd.f32 %v926, %v939
        %v942 = vadd.f32 %v927, %v940
        %vm943 = vcmp.ge.s32.totalorder %v929, 2
        %vm944 = vcmp.ge.s32.totalorder %v930, 2
        %945 = vrot.lane.b32.xlu0 %v941, 2
        %v946 = vpop.permute.xlu0 %945
        %947 = vrot.lane.b32.xlu0 %v942, 2
        %v948 = vpop.permute.xlu0 %947
        %vm949 = vcmp.lt.s32.totalorder %v906, 2
        %v950 = vsel %vm949, %v946, %v948
        %v951 = vsel %vm949, %v948, %v946
        %v952 = vsel %vm943, %v951, 0.0
        %v953 = vsel %vm944, %v950, 0.0
        %v954 = vadd.f32 %v941, %v952
        %v955 = vadd.f32 %v942, %v953
        %vm956 = vcmp.ge.s32.totalorder %v929, 4
        %vm957 = vcmp.ge.s32.totalorder %v930, 4
        %958 = vrot.lane.b32.xlu0 %v954, 4
        %v959 = vpop.permute.xlu0 %958
        %960 = vrot.lane.b32.xlu0 %v955, 4
        %v961 = vpop.permute.xlu0 %960
        %vm962 = vcmp.lt.s32.totalorder %v906, 4
        %v963 = vsel %vm962, %v959, %v961
        %v964 = vsel %vm962, %v961, %v959
        %v965 = vsel %vm956, %v964, 0.0
        %v966 = vsel %vm957, %v963, 0.0
        %v967 = vadd.f32 %v954, %v965
        %v968 = vadd.f32 %v955, %v966
        %vm969 = vcmp.ge.s32.totalorder %v929, 8
        %vm970 = vcmp.ge.s32.totalorder %v930, 8
        %971 = vrot.lane.b32.xlu0 %v967, 8
        %v972 = vpop.permute.xlu0 %971
        %973 = vrot.lane.b32.xlu0 %v968, 8
        %v974 = vpop.permute.xlu0 %973
        %vm975 = vcmp.lt.s32.totalorder %v906, 8
        %v976 = vsel %vm975, %v972, %v974
        %v977 = vsel %vm975, %v974, %v972
        %v978 = vsel %vm969, %v977, 0.0
        %v979 = vsel %vm970, %v976, 0.0
        %v980 = vadd.f32 %v967, %v978
        %v981 = vadd.f32 %v968, %v979
        %v982 = vsub.f32 0.0, %v980
        %v983 = vsub.f32 0.0, %v981
        %v984 = vmul.f32 %v982, 1.442695
        %v985 = vpow.pop %v984
        %v986 = vmul.f32 %v983, 1.442695
        %v987 = vpow.pop %v986
        %v990 = vcombine.low %v985, %v987
        %v992 = vunpack.c.l.s4 1966171168
        %v993 = vunpack.c.0.s8 %v992
        %v994 = vlaneseq
        %v995 = vshrl.u32 %v994, 7
        %v996 = vsub.s32 %v993, %v995
        %v997 = vrot.slane %v990, %v996
        %v999 = vunpack.c.l.s4 1966171168
        %v1000 = vunpack.c.0.s8 %v999
        %v1001 = vlaneseq
        %v1002 = vshrl.u32 %v1001, 7
        %v1003 = vsub.s32 %v1000, %v1002
        %v1004 = vrot.slane %v997, %v1003
        %1006 = vst.msk [vmem:[%s284] sm:$0x3] %vm881, %v1004
        %s1007 = sand.u32 %s165, 1
        %s1008 = scalar_lea.sflag [#allocation4], %s1007
        %s1009 = sand.u32 %s165, 1
        %s1010 = smul.addr %s1009, 2
        %s1011 = scalar_lea.vmem [#allocation3], %s1010
        %s1012 = sand.u32 %s191, 1
        %s1013 = scalar_lea.sflag [#allocation6], %s1012
        %s1014 = sand.u32 %s191, 1
        %s1015 = smul.addr %s1014, 2
        %s1016 = scalar_lea.vmem [#allocation5], %s1015
        // Predicated region
        $region45: #{tpu_custom_call.1} parent=43 // pred_check
          %p1017 = pneg %p175
        $region46: #{tpu_custom_call.1} parent=43 // pred_check_branch
          %1019 = sbr.rel (%p1017) target = $region48
        $region47: #{tpu_custom_call.1} parent=43 // pred_region
          %s1021 = ssub.s32 32, 32
          %1022 = vsyncadd %s1008, %s1021
          %s1023 = smul.addr %s26, 2
          %s1024 = smul.addr %s1023, 16
          %s1025 = scalar_lea.hbm %s6, %s1024
          %s1027 = sshll.u32 %s1011, 4
          %s1028 = int_to_ptr.vmem [resolvable:$true] %s1027
          %1030 = dma.vmem_to_hbm [thread:$0]  %s1028, 32, %s1025, %s1008
        $region48: #{tpu_custom_call.1} parent=43 // pred_fallthru
          _
        // Predicated region
        $region49: #{tpu_custom_call.1} parent=43 // pred_check
          %p1031 = pneg %p201
        $region50: #{tpu_custom_call.1} parent=43 // pred_check_branch
          %1033 = sbr.rel (%p1031) target = $region52
        $region51: #{tpu_custom_call.1} parent=43 // pred_region
          %s1035 = ssub.s32 32, 32
          %1036 = vsyncadd %s1013, %s1035
          %s1037 = smul.addr %s26, 2
          %s1038 = smul.addr %s1037, 16
          %s1039 = scalar_lea.hbm %s7, %s1038
          %s1041 = sshll.u32 %s1016, 4
          %s1042 = int_to_ptr.vmem [resolvable:$true] %s1041
          %1044 = dma.vmem_to_hbm [thread:$0]  %s1042, 32, %s1039, %s1013
        $region52: #{tpu_custom_call.1} parent=43 // pred_fallthru
          _
      $region44: #{tpu_custom_call.1} parent=5 // pred_fallthru
        _
      %p1045 = scmp.le.s32.totalorder 2, %s21
      // Predicated region
      $region53: #{tpu_custom_call.1} parent=5 // pred_check
        %p1046 = pneg %p1045
      $region54: #{tpu_custom_call.1} parent=5 // pred_check_branch
        %1048 = sbr.rel (%p1046) target = $region56
      $region55: #{tpu_custom_call.1} parent=5 // pred_region
        %s1049 = ssub.s32 %s21, 2
        // Predicated region
        $region57: #{tpu_custom_call.1} parent=55 // pred_check
          %p1050 = pneg %p181
        $region58: #{tpu_custom_call.1} parent=55 // pred_check_branch
          %1052 = sbr.rel (%p1050) target = $region60
        $region59: #{tpu_custom_call.1} parent=55 // pred_region
          %s1053 = sand.u32 %s166, 1
          %s1054 = scalar_lea.sflag [#allocation4], %s1053
          %s1055 = sand.u32 %s166, 1
          %s1056 = smul.addr %s1055, 2
          %s1057 = scalar_lea.vmem [#allocation3], %s1056
          %1058 = dma.done %s1054, 32
        $region60: #{tpu_custom_call.1} parent=55 // pred_fallthru
          _
        // Predicated region
        $region61: #{tpu_custom_call.1} parent=55 // pred_check
          %p1059 = pneg %p207
        $region62: #{tpu_custom_call.1} parent=55 // pred_check_branch
          %1061 = sbr.rel (%p1059) target = $region64
        $region63: #{tpu_custom_call.1} parent=55 // pred_region
          %s1062 = sand.u32 %s192, 1
          %s1063 = scalar_lea.sflag [#allocation6], %s1062
          %s1064 = sand.u32 %s192, 1
          %s1065 = smul.addr %s1064, 2
          %s1066 = scalar_lea.vmem [#allocation5], %s1065
          %1067 = dma.done %s1063, 32
        $region64: #{tpu_custom_call.1} parent=55 // pred_fallthru
          _
      $region56: #{tpu_custom_call.1} parent=5 // pred_fallthru
        _
    $region6: #{tpu_custom_call.1} parent=1 // loop_footer
      %s25 = sadd.s32 1, %s21
    $region7: #{tpu_custom_call.1} parent=1 // loop_footer_branch
      %20 = sbr.rel target = $region3
    $region8: #{tpu_custom_call.1} parent=1 // loop_exit
      _
    %1068 = vsyncpa [#allocation4], 1
    %s1069 = scalar_lea.sflag [#allocation4], 1
    %1070 = vsyncpa %s1069, 1
    %1071 = vsyncpa [#allocation6], 1
    %s1072 = scalar_lea.sflag [#allocation6], 1
    %1073 = vsyncpa %s1072, 1

</llo_original>
